<compile_context>
chip_gen: v7x
topology: tpu7x:2x2x1
jax: 0.10.0
libtpu: 0.0.40
codegen_flags: <defaults>
</compile_context>

<pallas_src>
import jax
import jax.numpy as jnp
import numpy as np
from jax.experimental import pallas as pl
from jax.experimental.pallas import tpu as pltpu


# ---------------------------------------------------------------------------
# Host-side constant: W-direction pool matrix (2 nonzeros per column, value
# `scale`).  With scale=0.25 and the unscaled H-pair add this is exactly
# bilinear(scale_factor=0.5, align_corners=False) for even H, W.
# ---------------------------------------------------------------------------
def _pool_matrix(w, wo, scale):
    pw = np.zeros((w, wo), np.float32)
    j = np.arange(wo)
    pw[2 * j, j] = scale
    pw[2 * j + 1, j] = scale
    return jnp.asarray(pw)


def _pick_row_tile(ho, ci, row_cols, itemsize=4, target_bytes=2 << 20):
    """Largest THo that is a multiple of 8, divides Ho, and keeps the input block
    (Ci * THo * row_cols * itemsize bytes) under `target_bytes`.  Falls back to Ho."""
    if ho % 8 != 0:
        return ho
    per_row = max(1, ci * row_cols * itemsize)
    max_rows = max(8, target_bytes // per_row)
    best = 8
    t = 8
    while t <= ho:
        if ho % t == 0 and t <= max_rows:
            best = t
        t += 8
    return best


def _vmem_limit(*block_bytes):
    need = 2 * sum(block_bytes) + 6 * max(block_bytes)   # double-buffers + intermediates
    return int(min(48 << 20, max(32 << 20, need)))


# ---------------------------------------------------------------------------
# Kernel 1 (fused): 2x2 average pool of all channels of one row-tile + 1x1 remap.
#   x_ref : (1, Ci, THo, 2W) VMEM   (each row = [src row 2h, src row 2h+1])
#   pw_ref: (W, Wo)          VMEM   (0.25-scaled column-pool matrix, constant)
#   w_ref : (Co, Ci)         SMEM   (1x1 conv weight, bias-free)
#   o_ref : (1, Co, THo, Wo) VMEM
# ---------------------------------------------------------------------------
def _make_fused_kernel(ci, co, tho, w, merge):
    def kernel(x_ref, pw_ref, w_ref, o_ref):
        x = x_ref[0]                                    # (Ci, THo, 2W)
        xh = x[:, :, :w] + x[:, :, w:]                  # H-pool: contiguous VPU add
        if merge:
            xw = jnp.dot(xh.reshape(ci * tho, w), pw_ref[...],
                         preferred_element_type=jnp.float32)          # (Ci*THo, Wo)
            pooled = [xw[c * tho:(c + 1) * tho, :] for c in range(ci)]
        else:
            pooled = [jnp.dot(xh[c], pw_ref[...],
                              preferred_element_type=jnp.float32) for c in range(ci)]
        # 1x1 channel remap: Co*Ci scalar-axpy on the VPU (K=Ci too small for MXU).
        for o in range(co):
            acc = w_ref[o, 0] * pooled[0]
            for c in range(1, ci):
                acc = acc + w_ref[o, c] * pooled[c]
            o_ref[0, o] = acc.astype(o_ref.dtype)
    return kernel


def fused_downsample_remap(x, wmap):
    """x: (N, Ci, H, W); wmap: (Co, Ci). Returns (N, Co, H//2, W//2)."""
    N, Ci, H, W = x.shape
    Co = wmap.shape[0]
    assert H % 2 == 0 and W % 2 == 0, "bilinear x0.5 kernel requires even H and W"
    Ho, Wo = H // 2, W // 2
    tho = _pick_row_tile(Ho, Ci, 2 * W)
    n_row = Ho // tho
    merge = (tho % 8 == 0)
    pw = _pool_matrix(W, Wo, 0.25)
    x2 = x.reshape(N, Ci, Ho, 2 * W)                 # free HBM view
    wmap = wmap.astype(jnp.float32)

    in_blk = Ci * tho * 2 * W * 4
    out_blk = Co * tho * Wo * 4
    pw_blk = W * Wo * 4

    flops = N * (Ci * Ho * W                         # H-pool adds
                 + 2 * Ci * Ho * W * Wo              # W-pool matmul
                 + 2 * Co * Ci * Ho * Wo)            # channel remap
    bytes_accessed = 4 * (x.size + pw.size + wmap.size + N * Co * Ho * Wo)

    return pl.pallas_call(
        _make_fused_kernel(Ci, Co, tho, W, merge),
        out_shape=jax.ShapeDtypeStruct((N, Co, Ho, Wo), x.dtype),
        grid_spec=pltpu.PrefetchScalarGridSpec(
            num_scalar_prefetch=0,
            grid=(N, n_row),
            in_specs=[
                pl.BlockSpec((1, Ci, tho, 2 * W), lambda n, i: (n, 0, i, 0)),
                pl.BlockSpec((W, Wo), lambda n, i: (0, 0)),
                pl.BlockSpec(memory_space=pltpu.MemorySpace.SMEM),
            ],
            out_specs=pl.BlockSpec((1, Co, tho, Wo), lambda n, i: (n, 0, i, 0)),
        ),
        compiler_params=pltpu.CompilerParams(
            dimension_semantics=("parallel", "parallel"),
            vmem_limit_bytes=_vmem_limit(in_blk, out_blk, pw_blk)),
        cost_estimate=pl.CostEstimate(flops=int(flops), transcendentals=0,
                                      bytes_accessed=int(bytes_accessed)),
    )(x2, pw, wmap)


# ---------------------------------------------------------------------------
# Kernel 2: 2x2 average pool only (intermediate stages / no channel remap).
# ---------------------------------------------------------------------------
def _make_pool_kernel(ci, tho, w, wo, merge):
    def kernel(x_ref, pw_ref, o_ref):
        x = x_ref[0]                                    # (Ci, THo, 2W)
        xh = x[:, :, :w] + x[:, :, w:]                  # (Ci, THo, W)
        if merge:
            xw = jnp.dot(xh.reshape(ci * tho, w), pw_ref[...],
                         preferred_element_type=jnp.float32)
            o_ref[0] = xw.reshape(ci, tho, wo).astype(o_ref.dtype)
        else:
            for c in range(ci):
                o_ref[0, c] = jnp.dot(xh[c], pw_ref[...],
                                      preferred_element_type=jnp.float32
                                      ).astype(o_ref.dtype)
    return kernel


def bilinear_downsample_half(x):
    """x: (N, C, H, W), H and W even. Returns (N, C, H//2, W//2)."""
    N, C, H, W = x.shape
    assert H % 2 == 0 and W % 2 == 0, "bilinear x0.5 kernel requires even H and W"
    Ho, Wo = H // 2, W // 2
    tho = _pick_row_tile(Ho, C, 2 * W)
    n_row = Ho // tho
    merge = (tho % 8 == 0)
    pw = _pool_matrix(W, Wo, 0.25)
    x2 = x.reshape(N, C, Ho, 2 * W)

    in_blk = C * tho * 2 * W * 4
    out_blk = C * tho * Wo * 4
    pw_blk = W * Wo * 4

    flops = N * (C * Ho * W + 2 * C * Ho * W * Wo)
    bytes_accessed = 4 * (x.size + pw.size + N * C * Ho * Wo)

    return pl.pallas_call(
        _make_pool_kernel(C, tho, W, Wo, merge),
        out_shape=jax.ShapeDtypeStruct((N, C, Ho, Wo), x.dtype),
        grid_spec=pltpu.PrefetchScalarGridSpec(
            num_scalar_prefetch=0,
            grid=(N, n_row),
            in_specs=[
                pl.BlockSpec((1, C, tho, 2 * W), lambda n, i: (n, 0, i, 0)),
                pl.BlockSpec((W, Wo), lambda n, i: (0, 0)),
            ],
            out_specs=pl.BlockSpec((1, C, tho, Wo), lambda n, i: (n, 0, i, 0)),
        ),
        compiler_params=pltpu.CompilerParams(
            dimension_semantics=("parallel", "parallel"),
            vmem_limit_bytes=_vmem_limit(in_blk, out_blk, pw_blk)),
        cost_estimate=pl.CostEstimate(flops=int(flops), transcendentals=0,
                                      bytes_accessed=int(bytes_accessed)),
    )(x2, pw)


# ---------------------------------------------------------------------------
# Kernel 3: 1x1 conv channel remap only (only used if n_stages == 0 with remap).
# Row-tiled, weight in SMEM, VPU axpy (K = Ci is tiny).
# ---------------------------------------------------------------------------
def _make_map_kernel(ci, co):
    def kernel(x_ref, w_ref, o_ref):
        for o in range(co):
            acc = w_ref[o, 0] * x_ref[0, 0]
            for c in range(1, ci):
                acc = acc + w_ref[o, c] * x_ref[0, c]
            o_ref[0, o] = acc.astype(o_ref.dtype)
    return kernel


def channel_map_1x1(x, wmap):
    N, Ci, H, W = x.shape
    Co = wmap.shape[0]
    th = _pick_row_tile(H, Ci, W)
    n_row = H // th
    wmap = wmap.astype(jnp.float32)
    in_blk = Ci * th * W * 4
    out_blk = Co * th * W * 4
    return pl.pallas_call(
        _make_map_kernel(Ci, Co),
        out_shape=jax.ShapeDtypeStruct((N, Co, H, W), x.dtype),
        grid_spec=pltpu.PrefetchScalarGridSpec(
            num_scalar_prefetch=0,
            grid=(N, n_row),
            in_specs=[
                pl.BlockSpec((1, Ci, th, W), lambda n, i: (n, 0, i, 0)),
                pl.BlockSpec(memory_space=pltpu.MemorySpace.SMEM),
            ],
            out_specs=pl.BlockSpec((1, Co, th, W), lambda n, i: (n, 0, i, 0)),
        ),
        compiler_params=pltpu.CompilerParams(
            dimension_semantics=("parallel", "parallel"),
            vmem_limit_bytes=_vmem_limit(in_blk, out_blk)),
    )(x, wmap)


# ---------------------------------------------------------------------------
# SpatialRescaler forward.
# ---------------------------------------------------------------------------
def spatial_rescaler(x, *, n_stages=1, channel_mapper_weight=None):
    assert n_stages >= 0
    if channel_mapper_weight is None:
        for _ in range(n_stages):
            x = bilinear_downsample_half(x)
        return x
    if n_stages == 0:
        return channel_map_1x1(x, channel_mapper_weight)
    # Intermediate stages: pool only.  Final stage: fused pool + remap.
    for _ in range(n_stages - 1):
        x = bilinear_downsample_half(x)
    return fused_downsample_remap(x, channel_mapper_weight)


if __name__ == "__main__":
    # Mirrors SpatialRescaler(n_stages=1, method='bilinear', multiplier=0.5,
    #                         in_channels=4, out_channels=8, bias=False)
    N, Cin, H, W = 2, 4, 16, 16
    Cout = 8
    n_stages = 1

    key = jax.random.PRNGKey(0)
    kx, kw = jax.random.split(key)
    x = jax.random.normal(kx, (N, Cin, H, W), dtype=jnp.float32)
    # Conv2d weight (Cout, Cin, 1, 1) squeezed to (Cout, Cin).
    w_map = jax.random.normal(kw, (Cout, Cin), dtype=jnp.float32) * 0.1

    out = spatial_rescaler(x, n_stages=n_stages, channel_mapper_weight=w_map)
    out = jax.block_until_ready(out)

    # Reference (plain JAX): bilinear x0.5 (align_corners=False) == 2x2 average
    # pool for even H/W, followed by the bias-free 1x1 conv.
    ref = x
    for _ in range(n_stages):
        n, c, h, w = ref.shape
        ref = ref.reshape(n, c, h // 2, 2, w // 2, 2).mean(axis=(3, 5))
    ref = jnp.einsum("oc,nchw->nohw", w_map, ref)

    assert out.shape == (N, Cout, H // 2, W // 2), out.shape
    np.testing.assert_allclose(np.asarray(out), np.asarray(ref), rtol=1e-5, atol=1e-5)
    print("KERNEL_OK")
</pallas_src>

<mosaic_0001>
module attributes {stable_mosaic.version = 11 : i64} {
  func.func @kernel(%arg0: i32, %arg1: i32, %arg2: memref<1x4x8x32xf32, #tpu.memory_space<vmem>>, %arg3: memref<16x8xf32, #tpu.memory_space<vmem>>, %arg4: memref<8x4xf32, #tpu.memory_space<smem>>, %arg5: memref<1x8x8x8xf32, #tpu.memory_space<vmem>>) attributes {dimension_semantics = [#tpu.dimension_semantics<parallel>, #tpu.dimension_semantics<parallel>], iteration_bounds = array<i64: 2, 1>, scalar_prefetch = 0 : i64, scratch_operands = 0 : i64, tpu.core_type = #tpu.core_type<tc>, window_params = [{transform_indices = @transform_0, window_bounds = array<i64: 1, 4, 8, 32>}, {pipeline_mode = #tpu.pipeline_mode<synchronous>, transform_indices = @transform_1, window_bounds = array<i64: 16, 8>}, {transform_indices = @transform_2, window_bounds = array<i64: 8, 4>}, {transform_indices = @transform_3, window_bounds = array<i64: 1, 8, 8, 8>}]} {
    %c0 = arith.constant 0 : index
    %c0_0 = arith.constant 0 : index
    %c0_1 = arith.constant 0 : index
    %c0_2 = arith.constant 0 : index
    %0 = vector.load %arg2[%c0, %c0_0, %c0_1, %c0_2] : memref<1x4x8x32xf32, #tpu.memory_space<vmem>>, vector<1x4x8x32xf32>
    %1 = vector.shape_cast %0 : vector<1x4x8x32xf32> to vector<4x8x32xf32>
    %2 = vector.extract_strided_slice %1 {offsets = [0, 0, 0], sizes = [4, 8, 16], strides = [1, 1, 1]} : vector<4x8x32xf32> to vector<4x8x16xf32>
    %3 = vector.extract_strided_slice %1 {offsets = [0, 0, 16], sizes = [4, 8, 16], strides = [1, 1, 1]} : vector<4x8x32xf32> to vector<4x8x16xf32>
    %4 = arith.addf %2, %3 : vector<4x8x16xf32>
    %5 = vector.shape_cast %4 : vector<4x8x16xf32> to vector<32x16xf32>
    %c0_3 = arith.constant 0 : index
    %c0_4 = arith.constant 0 : index
    %6 = vector.load %arg3[%c0_3, %c0_4] : memref<16x8xf32, #tpu.memory_space<vmem>>, vector<16x8xf32>
    %cst = arith.constant dense<0.000000e+00> : vector<32x8xf32>
    %7 = tpu.matmul %5, %6, %cst {dimension_numbers = #tpu.dot_dimension_numbers<[1], [0], [0], [1], [0, 0, 1, 1], [], []>} : vector<32x16xf32>, vector<16x8xf32>, vector<32x8xf32> -> vector<32x8xf32>
    %8 = vector.extract_strided_slice %7 {offsets = [0, 0], sizes = [8, 8], strides = [1, 1]} : vector<32x8xf32> to vector<8x8xf32>
    %9 = vector.extract_strided_slice %7 {offsets = [8, 0], sizes = [8, 8], strides = [1, 1]} : vector<32x8xf32> to vector<8x8xf32>
    %10 = vector.extract_strided_slice %7 {offsets = [16, 0], sizes = [8, 8], strides = [1, 1]} : vector<32x8xf32> to vector<8x8xf32>
    %11 = vector.extract_strided_slice %7 {offsets = [24, 0], sizes = [8, 8], strides = [1, 1]} : vector<32x8xf32> to vector<8x8xf32>
    %c0_5 = arith.constant 0 : index
    %c0_6 = arith.constant 0 : index
    %12 = memref.load %arg4[%c0_5, %c0_6] : memref<8x4xf32, #tpu.memory_space<smem>>
    %13 = vector.broadcast %12 : f32 to vector<8x8xf32>
    %14 = arith.mulf %13, %8 : vector<8x8xf32>
    %c0_7 = arith.constant 0 : index
    %c1 = arith.constant 1 : index
    %15 = memref.load %arg4[%c0_7, %c1] : memref<8x4xf32, #tpu.memory_space<smem>>
    %16 = vector.broadcast %15 : f32 to vector<8x8xf32>
    %17 = arith.mulf %16, %9 : vector<8x8xf32>
    %18 = arith.addf %14, %17 : vector<8x8xf32>
    %c0_8 = arith.constant 0 : index
    %c2 = arith.constant 2 : index
    %19 = memref.load %arg4[%c0_8, %c2] : memref<8x4xf32, #tpu.memory_space<smem>>
    %20 = vector.broadcast %19 : f32 to vector<8x8xf32>
    %21 = arith.mulf %20, %10 : vector<8x8xf32>
    %22 = arith.addf %18, %21 : vector<8x8xf32>
    %c0_9 = arith.constant 0 : index
    %c3 = arith.constant 3 : index
    %23 = memref.load %arg4[%c0_9, %c3] : memref<8x4xf32, #tpu.memory_space<smem>>
    %24 = vector.broadcast %23 : f32 to vector<8x8xf32>
    %25 = arith.mulf %24, %11 : vector<8x8xf32>
    %26 = arith.addf %22, %25 : vector<8x8xf32>
    %c0_10 = arith.constant 0 : index
    %c0_11 = arith.constant 0 : index
    %c0_12 = arith.constant 0 : index
    %c0_13 = arith.constant 0 : index
    %27 = vector.load %arg5[%c0_10, %c0_11, %c0_12, %c0_13] : memref<1x8x8x8xf32, #tpu.memory_space<vmem>>, vector<1x1x8x8xf32>
    %28 = vector.shape_cast %27 : vector<1x1x8x8xf32> to vector<8x8xf32>
    %29 = vector.shape_cast %26 : vector<8x8xf32> to vector<1x1x8x8xf32>
    tpu.vector_store %arg5[%c0_10, %c0_11, %c0_12, %c0_13], %29 {strides = array<i32>} : memref<1x8x8x8xf32, #tpu.memory_space<vmem>>, vector<1x1x8x8xf32>,
    %c1_14 = arith.constant 1 : index
    %c0_15 = arith.constant 0 : index
    %30 = memref.load %arg4[%c1_14, %c0_15] : memref<8x4xf32, #tpu.memory_space<smem>>
    %31 = vector.broadcast %30 : f32 to vector<8x8xf32>
    %32 = arith.mulf %31, %8 : vector<8x8xf32>
    %c1_16 = arith.constant 1 : index
    %c1_17 = arith.constant 1 : index
    %33 = memref.load %arg4[%c1_16, %c1_17] : memref<8x4xf32, #tpu.memory_space<smem>>
    %34 = vector.broadcast %33 : f32 to vector<8x8xf32>
    %35 = arith.mulf %34, %9 : vector<8x8xf32>
    %36 = arith.addf %32, %35 : vector<8x8xf32>
    %c1_18 = arith.constant 1 : index
    %c2_19 = arith.constant 2 : index
    %37 = memref.load %arg4[%c1_18, %c2_19] : memref<8x4xf32, #tpu.memory_space<smem>>
    %38 = vector.broadcast %37 : f32 to vector<8x8xf32>
    %39 = arith.mulf %38, %10 : vector<8x8xf32>
    %40 = arith.addf %36, %39 : vector<8x8xf32>
    %c1_20 = arith.constant 1 : index
    %c3_21 = arith.constant 3 : index
    %41 = memref.load %arg4[%c1_20, %c3_21] : memref<8x4xf32, #tpu.memory_space<smem>>
    %42 = vector.broadcast %41 : f32 to vector<8x8xf32>
    %43 = arith.mulf %42, %11 : vector<8x8xf32>
    %44 = arith.addf %40, %43 : vector<8x8xf32>
    %c0_22 = arith.constant 0 : index
    %c1_23 = arith.constant 1 : index
    %c0_24 = arith.constant 0 : index
    %c0_25 = arith.constant 0 : index
    %45 = vector.load %arg5[%c0_22, %c1_23, %c0_24, %c0_25] : memref<1x8x8x8xf32, #tpu.memory_space<vmem>>, vector<1x1x8x8xf32>
    %46 = vector.shape_cast %45 : vector<1x1x8x8xf32> to vector<8x8xf32>
    %47 = vector.shape_cast %44 : vector<8x8xf32> to vector<1x1x8x8xf32>
    tpu.vector_store %arg5[%c0_22, %c1_23, %c0_24, %c0_25], %47 {strides = array<i32>} : memref<1x8x8x8xf32, #tpu.memory_space<vmem>>, vector<1x1x8x8xf32>,
    %c2_26 = arith.constant 2 : index
    %c0_27 = arith.constant 0 : index
    %48 = memref.load %arg4[%c2_26, %c0_27] : memref<8x4xf32, #tpu.memory_space<smem>>
    %49 = vector.broadcast %48 : f32 to vector<8x8xf32>
    %50 = arith.mulf %49, %8 : vector<8x8xf32>
    %c2_28 = arith.constant 2 : index
    %c1_29 = arith.constant 1 : index
    %51 = memref.load %arg4[%c2_28, %c1_29] : memref<8x4xf32, #tpu.memory_space<smem>>
    %52 = vector.broadcast %51 : f32 to vector<8x8xf32>
    %53 = arith.mulf %52, %9 : vector<8x8xf32>
    %54 = arith.addf %50, %53 : vector<8x8xf32>
    %c2_30 = arith.constant 2 : index
    %c2_31 = arith.constant 2 : index
    %55 = memref.load %arg4[%c2_30, %c2_31] : memref<8x4xf32, #tpu.memory_space<smem>>
    %56 = vector.broadcast %55 : f32 to vector<8x8xf32>
    %57 = arith.mulf %56, %10 : vector<8x8xf32>
    %58 = arith.addf %54, %57 : vector<8x8xf32>
    %c2_32 = arith.constant 2 : index
    %c3_33 = arith.constant 3 : index
    %59 = memref.load %arg4[%c2_32, %c3_33] : memref<8x4xf32, #tpu.memory_space<smem>>
    %60 = vector.broadcast %59 : f32 to vector<8x8xf32>
    %61 = arith.mulf %60, %11 : vector<8x8xf32>
    %62 = arith.addf %58, %61 : vector<8x8xf32>
    %c0_34 = arith.constant 0 : index
    %c2_35 = arith.constant 2 : index
    %c0_36 = arith.constant 0 : index
    %c0_37 = arith.constant 0 : index
    %63 = vector.load %arg5[%c0_34, %c2_35, %c0_36, %c0_37] : memref<1x8x8x8xf32, #tpu.memory_space<vmem>>, vector<1x1x8x8xf32>
    %64 = vector.shape_cast %63 : vector<1x1x8x8xf32> to vector<8x8xf32>
    %65 = vector.shape_cast %62 : vector<8x8xf32> to vector<1x1x8x8xf32>
    tpu.vector_store %arg5[%c0_34, %c2_35, %c0_36, %c0_37], %65 {strides = array<i32>} : memref<1x8x8x8xf32, #tpu.memory_space<vmem>>, vector<1x1x8x8xf32>,
    %c3_38 = arith.constant 3 : index
    %c0_39 = arith.constant 0 : index
    %66 = memref.load %arg4[%c3_38, %c0_39] : memref<8x4xf32, #tpu.memory_space<smem>>
    %67 = vector.broadcast %66 : f32 to vector<8x8xf32>
    %68 = arith.mulf %67, %8 : vector<8x8xf32>
    %c3_40 = arith.constant 3 : index
    %c1_41 = arith.constant 1 : index
    %69 = memref.load %arg4[%c3_40, %c1_41] : memref<8x4xf32, #tpu.memory_space<smem>>
    %70 = vector.broadcast %69 : f32 to vector<8x8xf32>
    %71 = arith.mulf %70, %9 : vector<8x8xf32>
    %72 = arith.addf %68, %71 : vector<8x8xf32>
    %c3_42 = arith.constant 3 : index
    %c2_43 = arith.constant 2 : index
    %73 = memref.load %arg4[%c3_42, %c2_43] : memref<8x4xf32, #tpu.memory_space<smem>>
    %74 = vector.broadcast %73 : f32 to vector<8x8xf32>
    %75 = arith.mulf %74, %10 : vector<8x8xf32>
    %76 = arith.addf %72, %75 : vector<8x8xf32>
    %c3_44 = arith.constant 3 : index
    %c3_45 = arith.constant 3 : index
    %77 = memref.load %arg4[%c3_44, %c3_45] : memref<8x4xf32, #tpu.memory_space<smem>>
    %78 = vector.broadcast %77 : f32 to vector<8x8xf32>
    %79 = arith.mulf %78, %11 : vector<8x8xf32>
    %80 = arith.addf %76, %79 : vector<8x8xf32>
    %c0_46 = arith.constant 0 : index
    %c3_47 = arith.constant 3 : index
    %c0_48 = arith.constant 0 : index
    %c0_49 = arith.constant 0 : index
    %81 = vector.load %arg5[%c0_46, %c3_47, %c0_48, %c0_49] : memref<1x8x8x8xf32, #tpu.memory_space<vmem>>, vector<1x1x8x8xf32>
    %82 = vector.shape_cast %81 : vector<1x1x8x8xf32> to vector<8x8xf32>
    %83 = vector.shape_cast %80 : vector<8x8xf32> to vector<1x1x8x8xf32>
    tpu.vector_store %arg5[%c0_46, %c3_47, %c0_48, %c0_49], %83 {strides = array<i32>} : memref<1x8x8x8xf32, #tpu.memory_space<vmem>>, vector<1x1x8x8xf32>,
    %c4 = arith.constant 4 : index
    %c0_50 = arith.constant 0 : index
    %84 = memref.load %arg4[%c4, %c0_50] : memref<8x4xf32, #tpu.memory_space<smem>>
    %85 = vector.broadcast %84 : f32 to vector<8x8xf32>
    %86 = arith.mulf %85, %8 : vector<8x8xf32>
    %c4_51 = arith.constant 4 : index
    %c1_52 = arith.constant 1 : index
    %87 = memref.load %arg4[%c4_51, %c1_52] : memref<8x4xf32, #tpu.memory_space<smem>>
    %88 = vector.broadcast %87 : f32 to vector<8x8xf32>
    %89 = arith.mulf %88, %9 : vector<8x8xf32>
    %90 = arith.addf %86, %89 : vector<8x8xf32>
    %c4_53 = arith.constant 4 : index
    %c2_54 = arith.constant 2 : index
    %91 = memref.load %arg4[%c4_53, %c2_54] : memref<8x4xf32, #tpu.memory_space<smem>>
    %92 = vector.broadcast %91 : f32 to vector<8x8xf32>
    %93 = arith.mulf %92, %10 : vector<8x8xf32>
    %94 = arith.addf %90, %93 : vector<8x8xf32>
    %c4_55 = arith.constant 4 : index
    %c3_56 = arith.constant 3 : index
    %95 = memref.load %arg4[%c4_55, %c3_56] : memref<8x4xf32, #tpu.memory_space<smem>>
    %96 = vector.broadcast %95 : f32 to vector<8x8xf32>
    %97 = arith.mulf %96, %11 : vector<8x8xf32>
    %98 = arith.addf %94, %97 : vector<8x8xf32>
    %c0_57 = arith.constant 0 : index
    %c4_58 = arith.constant 4 : index
    %c0_59 = arith.constant 0 : index
    %c0_60 = arith.constant 0 : index
    %99 = vector.load %arg5[%c0_57, %c4_58, %c0_59, %c0_60] : memref<1x8x8x8xf32, #tpu.memory_space<vmem>>, vector<1x1x8x8xf32>
    %100 = vector.shape_cast %99 : vector<1x1x8x8xf32> to vector<8x8xf32>
    %101 = vector.shape_cast %98 : vector<8x8xf32> to vector<1x1x8x8xf32>
    tpu.vector_store %arg5[%c0_57, %c4_58, %c0_59, %c0_60], %101 {strides = array<i32>} : memref<1x8x8x8xf32, #tpu.memory_space<vmem>>, vector<1x1x8x8xf32>,
    %c5 = arith.constant 5 : index
    %c0_61 = arith.constant 0 : index
    %102 = memref.load %arg4[%c5, %c0_61] : memref<8x4xf32, #tpu.memory_space<smem>>
    %103 = vector.broadcast %102 : f32 to vector<8x8xf32>
    %104 = arith.mulf %103, %8 : vector<8x8xf32>
    %c5_62 = arith.constant 5 : index
    %c1_63 = arith.constant 1 : index
    %105 = memref.load %arg4[%c5_62, %c1_63] : memref<8x4xf32, #tpu.memory_space<smem>>
    %106 = vector.broadcast %105 : f32 to vector<8x8xf32>
    %107 = arith.mulf %106, %9 : vector<8x8xf32>
    %108 = arith.addf %104, %107 : vector<8x8xf32>
    %c5_64 = arith.constant 5 : index
    %c2_65 = arith.constant 2 : index
    %109 = memref.load %arg4[%c5_64, %c2_65] : memref<8x4xf32, #tpu.memory_space<smem>>
    %110 = vector.broadcast %109 : f32 to vector<8x8xf32>
    %111 = arith.mulf %110, %10 : vector<8x8xf32>
    %112 = arith.addf %108, %111 : vector<8x8xf32>
    %c5_66 = arith.constant 5 : index
    %c3_67 = arith.constant 3 : index
    %113 = memref.load %arg4[%c5_66, %c3_67] : memref<8x4xf32, #tpu.memory_space<smem>>
    %114 = vector.broadcast %113 : f32 to vector<8x8xf32>
    %115 = arith.mulf %114, %11 : vector<8x8xf32>
    %116 = arith.addf %112, %115 : vector<8x8xf32>
    %c0_68 = arith.constant 0 : index
    %c5_69 = arith.constant 5 : index
    %c0_70 = arith.constant 0 : index
    %c0_71 = arith.constant 0 : index
    %117 = vector.load %arg5[%c0_68, %c5_69, %c0_70, %c0_71] : memref<1x8x8x8xf32, #tpu.memory_space<vmem>>, vector<1x1x8x8xf32>
    %118 = vector.shape_cast %117 : vector<1x1x8x8xf32> to vector<8x8xf32>
    %119 = vector.shape_cast %116 : vector<8x8xf32> to vector<1x1x8x8xf32>
    tpu.vector_store %arg5[%c0_68, %c5_69, %c0_70, %c0_71], %119 {strides = array<i32>} : memref<1x8x8x8xf32, #tpu.memory_space<vmem>>, vector<1x1x8x8xf32>,
    %c6 = arith.constant 6 : index
    %c0_72 = arith.constant 0 : index
    %120 = memref.load %arg4[%c6, %c0_72] : memref<8x4xf32, #tpu.memory_space<smem>>
    %121 = vector.broadcast %120 : f32 to vector<8x8xf32>
    %122 = arith.mulf %121, %8 : vector<8x8xf32>
    %c6_73 = arith.constant 6 : index
    %c1_74 = arith.constant 1 : index
    %123 = memref.load %arg4[%c6_73, %c1_74] : memref<8x4xf32, #tpu.memory_space<smem>>
    %124 = vector.broadcast %123 : f32 to vector<8x8xf32>
    %125 = arith.mulf %124, %9 : vector<8x8xf32>
    %126 = arith.addf %122, %125 : vector<8x8xf32>
    %c6_75 = arith.constant 6 : index
    %c2_76 = arith.constant 2 : index
    %127 = memref.load %arg4[%c6_75, %c2_76] : memref<8x4xf32, #tpu.memory_space<smem>>
    %128 = vector.broadcast %127 : f32 to vector<8x8xf32>
    %129 = arith.mulf %128, %10 : vector<8x8xf32>
    %130 = arith.addf %126, %129 : vector<8x8xf32>
    %c6_77 = arith.constant 6 : index
    %c3_78 = arith.constant 3 : index
    %131 = memref.load %arg4[%c6_77, %c3_78] : memref<8x4xf32, #tpu.memory_space<smem>>
    %132 = vector.broadcast %131 : f32 to vector<8x8xf32>
    %133 = arith.mulf %132, %11 : vector<8x8xf32>
    %134 = arith.addf %130, %133 : vector<8x8xf32>
    %c0_79 = arith.constant 0 : index
    %c6_80 = arith.constant 6 : index
    %c0_81 = arith.constant 0 : index
    %c0_82 = arith.constant 0 : index
    %135 = vector.load %arg5[%c0_79, %c6_80, %c0_81, %c0_82] : memref<1x8x8x8xf32, #tpu.memory_space<vmem>>, vector<1x1x8x8xf32>
    %136 = vector.shape_cast %135 : vector<1x1x8x8xf32> to vector<8x8xf32>
    %137 = vector.shape_cast %134 : vector<8x8xf32> to vector<1x1x8x8xf32>
    tpu.vector_store %arg5[%c0_79, %c6_80, %c0_81, %c0_82], %137 {strides = array<i32>} : memref<1x8x8x8xf32, #tpu.memory_space<vmem>>, vector<1x1x8x8xf32>,
    %c7 = arith.constant 7 : index
    %c0_83 = arith.constant 0 : index
    %138 = memref.load %arg4[%c7, %c0_83] : memref<8x4xf32, #tpu.memory_space<smem>>
    %139 = vector.broadcast %138 : f32 to vector<8x8xf32>
    %140 = arith.mulf %139, %8 : vector<8x8xf32>
    %c7_84 = arith.constant 7 : index
    %c1_85 = arith.constant 1 : index
    %141 = memref.load %arg4[%c7_84, %c1_85] : memref<8x4xf32, #tpu.memory_space<smem>>
    %142 = vector.broadcast %141 : f32 to vector<8x8xf32>
    %143 = arith.mulf %142, %9 : vector<8x8xf32>
    %144 = arith.addf %140, %143 : vector<8x8xf32>
    %c7_86 = arith.constant 7 : index
    %c2_87 = arith.constant 2 : index
    %145 = memref.load %arg4[%c7_86, %c2_87] : memref<8x4xf32, #tpu.memory_space<smem>>
    %146 = vector.broadcast %145 : f32 to vector<8x8xf32>
    %147 = arith.mulf %146, %10 : vector<8x8xf32>
    %148 = arith.addf %144, %147 : vector<8x8xf32>
    %c7_88 = arith.constant 7 : index
    %c3_89 = arith.constant 3 : index
    %149 = memref.load %arg4[%c7_88, %c3_89] : memref<8x4xf32, #tpu.memory_space<smem>>
    %150 = vector.broadcast %149 : f32 to vector<8x8xf32>
    %151 = arith.mulf %150, %11 : vector<8x8xf32>
    %152 = arith.addf %148, %151 : vector<8x8xf32>
    %c0_90 = arith.constant 0 : index
    %c7_91 = arith.constant 7 : index
    %c0_92 = arith.constant 0 : index
    %c0_93 = arith.constant 0 : index
    %153 = vector.load %arg5[%c0_90, %c7_91, %c0_92, %c0_93] : memref<1x8x8x8xf32, #tpu.memory_space<vmem>>, vector<1x1x8x8xf32>
    %154 = vector.shape_cast %153 : vector<1x1x8x8xf32> to vector<8x8xf32>
    %155 = vector.shape_cast %152 : vector<8x8xf32> to vector<1x1x8x8xf32>
    tpu.vector_store %arg5[%c0_90, %c7_91, %c0_92, %c0_93], %155 {strides = array<i32>} : memref<1x8x8x8xf32, #tpu.memory_space<vmem>>, vector<1x1x8x8xf32>,
    return
  }
  func.func @transform_0(%arg0: i32, %arg1: i32) -> (i32, i32, i32, i32) {
    %c0_i32 = arith.constant 0 : i32
    %c0_i32_0 = arith.constant 0 : i32
    %c0_i32_1 = arith.constant 0 : i32
    return %arg0, %c0_i32, %arg1, %c0_i32_0 : i32, i32, i32, i32
  }
  func.func @transform_1(%arg0: i32, %arg1: i32) -> (i32, i32) {
    %c0_i32 = arith.constant 0 : i32
    %c0_i32_0 = arith.constant 0 : i32
    %c0_i32_1 = arith.constant 0 : i32
    return %c0_i32, %c0_i32_0 : i32, i32
  }
  func.func @transform_2(%arg0: i32, %arg1: i32) -> (i32, i32) {
    %c0_i32 = arith.constant 0 : i32
    %c0_i32_0 = arith.constant 0 : i32
    %c0_i32_1 = arith.constant 0 : i32
    return %c0_i32, %c0_i32_0 : i32, i32
  }
  func.func @transform_3(%arg0: i32, %arg1: i32) -> (i32, i32, i32, i32) {
    %c0_i32 = arith.constant 0 : i32
    %c0_i32_0 = arith.constant 0 : i32
    %c0_i32_1 = arith.constant 0 : i32
    return %arg0, %c0_i32, %arg1, %c0_i32_0 : i32, i32, i32, i32
  }
}

</mosaic_0001>

<llo_original>
// kernel: tpu_custom_call.1
$region0: #{tpu_custom_call.1}
  #allocation0 [shape = 'u32[]', space=smem, size = 0x4, offset = 0x4, fixed_abs, tag = 'smem constant byte address 0x4 - core index']
  #allocation1 [shape = 'u32[144,128]{1,0:T(1,128)}', space=vmem, size = 0x12000, scoped, tag = 'internal scratch']
  %s0 = inlined_call_operand.hbm [shape: f32[2,4,8,32], index: 0, kind: input, shape index: {}]
  %s1 = inlined_call_operand.vmem [shape: f32[16,8], index: 1, kind: input, shape index: {}]
  %s2 = inlined_call_operand.vmem [shape: f32[8,4], index: 2, kind: input, shape index: {}]
  %s3 = inlined_call_operand.hbm [shape: f32[2,8,8,8], index: 3, kind: output, shape index: {}]
  %s4 = sld [smem:[#allocation0]]
  $region53: #{tpu_custom_call.1} parent=0
    _
  %s6 = ssub.s32 1, %s4
  %s7 = scalar_select 0, %s6, %s4
  $region1: #{tpu_custom_call.1} parent=0
    #allocation2 [shape = 'u8[32768]{0}', space=vmem, size = 0x8000, scoped, tag = 'input window, operand 0']
    #allocation3 [shape = 's32[2]{0}', space=sflag, size = 0x8, scoped, tag = 'scoped memory for tpu_custom_call.1']
    #allocation4 [shape = 's32[2]{0}', space=sflag, size = 0x8, scoped, tag = 'scoped memory for tpu_custom_call.1']
    #allocation5 [shape = 's32[2]{0}', space=sflag, size = 0x8, scoped, tag = 'scoped memory for tpu_custom_call.1']
    #allocation6 [shape = 'u8[4096]{0}', space=smem, size = 0x1000, scoped, tag = 'input window, operand 2, single buffered']
    #allocation7 [shape = 'u8[65536]{0}', space=vmem, size = 0x10000, scoped, tag = 'output window, operand 0']
    %8 = vsyncpa [#allocation3], 0
    %s9 = scalar_lea.sflag [#allocation3], 1
    %10 = vsyncpa %s9, 0
    %11 = vsyncpa [#allocation5], 0
    %12 = vsyncpa [#allocation4], 0
    %s13 = scalar_lea.sflag [#allocation4], 1
    %14 = vsyncpa %s13, 0
    loop: start=0, step=1, limit=4
    $region2: #{tpu_custom_call.1} parent=1 // loop_pre_header
      _
    $region3: #{tpu_custom_call.1} parent=1 // loop_header
      %s16 = sphi 0, %s20
      %p17 = scmp.ge.s32.totalorder %s16, 4
      %s23 = sphi 0, %s35
      %s24 = sphi 0, %s31
      %s25 = sphi 0, %s23
      %s26 = sphi 0, %s24
      %s27 = sphi 0, %s25
      %s28 = sphi 0, %s26
      %s40 = sphi 0, %s42
      %s43 = sphi 0, %s40
      %s44 = sphi 0, %s43
      %s60 = sphi 0, %s44
      %s64 = sphi 0, %s64
      %s66 = sphi 0, %s64
      %s67 = sphi 0, %s66
      %s81 = sphi 0, %s67
      %s85 = sphi 0, %s85
      %s87 = sphi 0, %s85
      %s88 = sphi 0, %s87
      %s102 = sphi 0, %s88
      %s110 = sphi 0, %s112
      %s113 = sphi 0, %s110
      %s114 = sphi 0, %s113
      %s130 = sphi 0, %s114
    $region4: #{tpu_custom_call.1} parent=1 // loop_header_branch
      %19 = sbr.rel (%p17) target = $region8
    $region5: #{tpu_custom_call.1} parent=1 // loop_body
      %s21 = ssub.s32 %s16, 1
      %s22 = ssub.s32 %s16, 2
      %s29 = sadd.s32 1, %s24
      %p30 = scmp.ge.s32.totalorder %s29, 1
      %s31 = scalar_select %p30, 0, %s29
      %s32 = sadd.s32 1, %s23
      %s33 = scalar_select %p30, %s32, %s23
      %p34 = scmp.ge.s32.totalorder %s33, 2
      %s35 = scalar_select %p34, 0, %s33
      %s36 = ssub.s32 %s23, %s35
      %s37 = ssub.s32 %s24, %s31
      %s38 = sor.u32 %s36, %s37
      %p39 = scmp.eq.s32.totalorder %s38, 0
      %s41 = sadd.s32 %s40, 1
      %s42 = scalar_select %p39, %s40, %s41
      %p45 = pneg %p39
      %p46 = scmp.eq.s32.totalorder %s16, 1
      %p47 = por %p45, %p46
      %p48 = scmp.ne.s32.totalorder %s40, %s43
      %p49 = scmp.eq.s32.totalorder %s16, 0
      %p50 = por %p48, %p49
      %p51 = scmp.ne.s32.totalorder %s40, %s43
      %p52 = scmp.eq.s32.totalorder %s21, 1
      %p53 = por %p51, %p52
      %p54 = scmp.ne.s32.totalorder %s43, %s44
      %p55 = scmp.eq.s32.totalorder %s21, 0
      %p56 = por %p54, %p55
      %p57 = scmp.ne.s32.totalorder %s43, %s44
      %p58 = scmp.eq.s32.totalorder %s22, 1
      %p59 = por %p57, %p58
      %p61 = scmp.ne.s32.totalorder %s44, %s60
      %p62 = scmp.eq.s32.totalorder %s22, 0
      %p63 = por %p61, %p62
      %s65 = sadd.s32 %s64, 1
      %p68 = scmp.eq.s32.totalorder %s16, 1
      %p69 = scmp.ne.s32.totalorder %s64, %s66
      %p70 = scmp.eq.s32.totalorder %s16, 0
      %p71 = por %p69, %p70
      %p72 = scmp.ne.s32.totalorder %s64, %s66
      %p73 = scmp.eq.s32.totalorder %s21, 1
      %p74 = por %p72, %p73
      %p75 = scmp.ne.s32.totalorder %s66, %s67
      %p76 = scmp.eq.s32.totalorder %s21, 0
      %p77 = por %p75, %p76
      %p78 = scmp.ne.s32.totalorder %s66, %s67
      %p79 = scmp.eq.s32.totalorder %s22, 1
      %p80 = por %p78, %p79
      %p82 = scmp.ne.s32.totalorder %s67, %s81
      %p83 = scmp.eq.s32.totalorder %s22, 0
      %p84 = por %p82, %p83
      %s86 = sadd.s32 %s85, 1
      %p89 = scmp.eq.s32.totalorder %s16, 1
      %p90 = scmp.ne.s32.totalorder %s85, %s87
      %p91 = scmp.eq.s32.totalorder %s16, 0
      %p92 = por %p90, %p91
      %p93 = scmp.ne.s32.totalorder %s85, %s87
      %p94 = scmp.eq.s32.totalorder %s21, 1
      %p95 = por %p93, %p94
      %p96 = scmp.ne.s32.totalorder %s87, %s88
      %p97 = scmp.eq.s32.totalorder %s21, 0
      %p98 = por %p96, %p97
      %p99 = scmp.ne.s32.totalorder %s87, %s88
      %p100 = scmp.eq.s32.totalorder %s22, 1
      %p101 = por %p99, %p100
      %p103 = scmp.ne.s32.totalorder %s88, %s102
      %p104 = scmp.eq.s32.totalorder %s22, 0
      %p105 = por %p103, %p104
      %s106 = ssub.s32 %s23, %s35
      %s107 = ssub.s32 %s24, %s31
      %s108 = sor.u32 %s106, %s107
      %p109 = scmp.eq.s32.totalorder %s108, 0
      %s111 = sadd.s32 %s110, 1
      %s112 = scalar_select %p109, %s110, %s111
      %p115 = pneg %p109
      %p116 = scmp.eq.s32.totalorder %s16, 1
      %p117 = por %p115, %p116
      %p118 = scmp.ne.s32.totalorder %s110, %s113
      %p119 = scmp.eq.s32.totalorder %s16, 0
      %p120 = por %p118, %p119
      %p121 = scmp.ne.s32.totalorder %s110, %s113
      %p122 = scmp.eq.s32.totalorder %s21, 1
      %p123 = por %p121, %p122
      %p124 = scmp.ne.s32.totalorder %s113, %s114
      %p125 = scmp.eq.s32.totalorder %s21, 0
      %p126 = por %p124, %p125
      %p127 = scmp.ne.s32.totalorder %s113, %s114
      %p128 = scmp.eq.s32.totalorder %s22, 1
      %p129 = por %p127, %p128
      %p131 = scmp.ne.s32.totalorder %s114, %s130
      %p132 = scmp.eq.s32.totalorder %s22, 0
      %p133 = por %p131, %p132
      %p134 = scmp.le.s32.totalorder 1, %s16
      %p135 = scmp.lt.s32.totalorder %s16, 3
      %p136 = pnand %p134, %p135
      %p137 = pneg %p136
      // Predicated region
      $region9: #{tpu_custom_call.1} parent=5 // pred_check
        _
      $region10: #{tpu_custom_call.1} parent=5 // pred_check_branch
        %139 = sbr.rel (%p136) target = $region12
      $region11: #{tpu_custom_call.1} parent=5 // pred_region
        %s140 = ssub.s32 %s16, 1
        // Predicated region
        $region13: #{tpu_custom_call.1} parent=11 // pred_check
          %p141 = pneg %p77
        $region14: #{tpu_custom_call.1} parent=11 // pred_check_branch
          %143 = sbr.rel (%p141) target = $region16
        $region15: #{tpu_custom_call.1} parent=11 // pred_region
          _
        $region16: #{tpu_custom_call.1} parent=11 // pred_fallthru
          _
        // Predicated region
        $region17: #{tpu_custom_call.1} parent=11 // pred_check
          %p144 = pneg %p98
        $region18: #{tpu_custom_call.1} parent=11 // pred_check_branch
          %146 = sbr.rel (%p144) target = $region20
        $region19: #{tpu_custom_call.1} parent=11 // pred_region
          %s148 = ssub.s32 128, 128
          %149 = vsyncadd [#allocation5], %s148
          %s151 = sshll.u32 %s2, 4
          %s152 = int_to_ptr.vmem [resolvable:$true] %s151
          %154 = dma.vmem_to_smem %s152, 128, [#allocation6], [#allocation5]
        $region20: #{tpu_custom_call.1} parent=11 // pred_fallthru
          _
      $region12: #{tpu_custom_call.1} parent=5 // pred_fallthru
        _
      %p155 = scmp.lt.s32.totalorder %s16, 2
      // Predicated region
      $region21: #{tpu_custom_call.1} parent=5 // pred_check
        %p156 = pneg %p155
      $region22: #{tpu_custom_call.1} parent=5 // pred_check_branch
        %158 = sbr.rel (%p156) target = $region24
      $region23: #{tpu_custom_call.1} parent=5 // pred_region
        // Predicated region
        $region25: #{tpu_custom_call.1} parent=23 // pred_check
          %p159 = pneg %p50
        $region26: #{tpu_custom_call.1} parent=23 // pred_check_branch
          %161 = sbr.rel (%p159) target = $region28
        $region27: #{tpu_custom_call.1} parent=23 // pred_region
          %s162 = sand.u32 %s40, 1
          %s163 = scalar_lea.sflag [#allocation3], %s162
          %s164 = sand.u32 %s40, 1
          %s165 = smul.addr %s164, 32
          %s166 = scalar_lea.vmem [#allocation2], %s165
          %s168 = ssub.s32 512, 512
          %169 = vsyncadd %s163, %s168
          %s170 = smul.addr %s23, 4
          %s171 = sadd.s32 %s24, %s170
          %s172 = smul.addr %s171, 128
          %s173 = scalar_lea.hbm %s0, %s172
          %s174 = sshll.u32 %s166, 4
          %s175 = int_to_ptr.vmem [resolvable:$true] %s174
          %180 = dma.hbm_to_vmem [thread:$0]  %s173, 512, %s175, %s163, 128, 128, 8
        $region28: #{tpu_custom_call.1} parent=23 // pred_fallthru
          _
      $region24: #{tpu_custom_call.1} parent=5 // pred_fallthru
        _
      %p181 = scmp.le.s32.totalorder 1, %s16
      %p182 = scmp.lt.s32.totalorder %s16, 3
      %p183 = pnand %p181, %p182
      %p184 = pneg %p183
      // Predicated region
      $region29: #{tpu_custom_call.1} parent=5 // pred_check
        _
      $region30: #{tpu_custom_call.1} parent=5 // pred_check_branch
        %186 = sbr.rel (%p183) target = $region32
      $region31: #{tpu_custom_call.1} parent=5 // pred_region
        %s187 = ssub.s32 %s16, 1
        %s188 = sand.u32 %s43, 1
        %s189 = scalar_lea.sflag [#allocation3], %s188
        %s190 = sand.u32 %s43, 1
        %s191 = smul.addr %s190, 32
        %s192 = scalar_lea.vmem [#allocation2], %s191
        // Predicated region
        $region33: #{tpu_custom_call.1} parent=31 // pred_check
          %p193 = pneg %p56
        $region34: #{tpu_custom_call.1} parent=31 // pred_check_branch
          %195 = sbr.rel (%p193) target = $region36
        $region35: #{tpu_custom_call.1} parent=31 // pred_region
          %196 = dma.done %s189, 512
        $region36: #{tpu_custom_call.1} parent=31 // pred_fallthru
          _
        // Predicated region
        $region37: #{tpu_custom_call.1} parent=31 // pred_check
          %p197 = pneg %p98
        $region38: #{tpu_custom_call.1} parent=31 // pred_check_branch
          %199 = sbr.rel (%p197) target = $region40
        $region39: #{tpu_custom_call.1} parent=31 // pred_region
          %200 = dma.done [#allocation5], 128
        $region40: #{tpu_custom_call.1} parent=31 // pred_fallthru
          _
        %201 = sfence
        %s202 = sand.u32 %s43, 1
        %s203 = scalar_lea.sflag [#allocation3], %s202
        %s204 = sand.u32 %s43, 1
        %s205 = smul.addr %s204, 32
        %s206 = scalar_lea.vmem [#allocation2], %s205
        %p207 = pneg %p56
        %p208 = pneg %p53
        %p209 = pneg %p77
        %p210 = pneg %p74
        %p211 = pneg %p98
        %p212 = pneg %p95
        %p213 = pneg %p126
        %p214 = pneg %p123
        %s215 = sand.u32 %s113, 1
        %s216 = scalar_lea.sflag [#allocation4], %s215
        %s217 = sand.u32 %s113, 1
        %s218 = smul.addr %s217, 64
        %s219 = scalar_lea.vmem [#allocation7], %s218
        %v220 = vld [vmem:[%s192] sm:$0xff]
        %v221 = vld [vmem:[%s192 + $0x8] sm:$0xff]
        %v222 = vld [vmem:[%s192 + $0x10] sm:$0xff]
        %v223 = vld [vmem:[%s192 + $0x18] sm:$0xff]
        %228 = vrot.lane.b32.xlu0 %v220, 112
        %v229 = vpop.permute.xlu0 %228
        %230 = vrot.lane.b32.xlu0 %v221, 112
        %v231 = vpop.permute.xlu0 %230
        %232 = vrot.lane.b32.xlu0 %v222, 112
        %v233 = vpop.permute.xlu0 %232
        %234 = vrot.lane.b32.xlu0 %v223, 112
        %v235 = vpop.permute.xlu0 %234
        %v240 = vadd.f32 %v220, %v229
        %v241 = vadd.f32 %v221, %v231
        %v242 = vadd.f32 %v222, %v233
        %v243 = vadd.f32 %v223, %v235
        %v244 = vld [vmem:[%s1] sm:$0xff]
        %v245 = vld [vmem:[%s1 + $0x8] sm:$0xff]
        %vm246 = vcmask 130048
        %v248 = vsel %vm246, %v240, 0
        %v251 = vsel %vm246, %v241, 0
        %v254 = vsel %vm246, %v242, 0
        %v257 = vsel %vm246, %v243, 0
        %259 = vmatprep.subr.mxu0 0.0
        %260 = vmatpush1.msra.mxu0 %v244
        %261 = vmatprep.subr.mxu0 0.0
        %262 = vmatpush1.msra.mxu0 %v245
        %263 = vmatprep.subr.mxu0 0.0
        %264 = vmatpush1.msra.mxu0 0.0
        %265 = vmatprep.subr.mxu0 0.0
        %266 = vmatpush1.msra.mxu0 0.0
        %267 = vmatprep.subr.mxu0 0.0
        %268 = vmatpush1.msra.mxu0 0.0
        %269 = vmatprep.subr.mxu0 0.0
        %270 = vmatpush1.msra.mxu0 0.0
        %271 = vmatprep.subr.mxu0 0.0
        %272 = vmatpush1.msra.mxu0 0.0
        %273 = vmatprep.subr.mxu0 0.0
        %274 = vmatpush1.msra.mxu0 0.0
        %275 = vmatprep.subr.mxu0 0.0
        %276 = vmatpush1.msra.mxu0 0.0
        %277 = vmatprep.subr.mxu0 0.0
        %278 = vmatpush1.msra.mxu0 0.0
        %279 = vmatprep.subr.mxu0 0.0
        %280 = vmatpush1.msra.mxu0 0.0
        %281 = vmatprep.subr.mxu0 0.0
        %282 = vmatpush1.msra.mxu0 0.0
        %283 = vmatprep.subr.mxu0 0.0
        %284 = vmatpush1.msra.mxu0 0.0
        %285 = vmatprep.subr.mxu0 0.0
        %286 = vmatpush1.msra.mxu0 0.0
        %287 = vmatprep.subr.mxu0 0.0
        %288 = vmatpush1.msra.mxu0 0.0
        %289 = vmatprep.subr.mxu0 0.0
        %290 = vmatpush1.msra.mxu0 0.0
        %291 = vmatprep.subr.mxu0 0.0
        %292 = vmatpush1.msra.mxu0 0.0
        %293 = vmatprep.subr.mxu0 0.0
        %294 = vmatpush1.msra.mxu0 0.0
        %295 = vmatprep.subr.mxu0 0.0
        %296 = vmatpush1.msra.mxu0 0.0
        %297 = vmatprep.subr.mxu0 0.0
        %298 = vmatpush1.msra.mxu0 0.0
        %299 = vmatprep.subr.mxu0 0.0
        %300 = vmatpush1.msra.mxu0 0.0
        %301 = vmatprep.subr.mxu0 0.0
        %302 = vmatpush1.msra.mxu0 0.0
        %303 = vmatprep.subr.mxu0 0.0
        %304 = vmatpush1.msra.mxu0 0.0
        %305 = vmatprep.subr.mxu0 0.0
        %306 = vmatpush1.msra.mxu0 0.0
        %307 = vmatprep.subr.mxu0 0.0
        %308 = vmatpush1.msra.mxu0 0.0
        %309 = vmatprep.subr.mxu0 0.0
        %310 = vmatpush1.msra.mxu0 0.0
        %311 = vmatprep.subr.mxu0 0.0
        %312 = vmatpush1.msra.mxu0 0.0
        %313 = vmatprep.subr.mxu0 0.0
        %314 = vmatpush1.msra.mxu0 0.0
        %315 = vmatprep.subr.mxu0 0.0
        %316 = vmatpush1.msra.mxu0 0.0
        %317 = vmatprep.subr.mxu0 0.0
        %318 = vmatpush1.msra.mxu0 0.0
        %319 = vmatprep.subr.mxu0 0.0
        %320 = vmatpush1.msra.mxu0 0.0
        %321 = vmatprep.subr.mxu0 0.0
        %322 = vmatpush1.msra.mxu0 0.0
        %323 = vmatprep.mubr.f32.mxu0 0.0
        %324 = vmatmul.mubr.f32.gmra.mrb[0].mxu0 %v248
        %v325 = vpop.f32.mrb[0].mxu0
        %v326 = vadd.f32 0.0, %v325
        %v327 = vpop.f32.mrb[0].mxu0
        %328 = vmatprep.mubr.f32.mxu0 0.0
        %329 = vmatmul.mubr.f32.gmra.mrb[0].mxu0 %v251
        %v330 = vpop.f32.mrb[0].mxu0
        %v331 = vadd.f32 0.0, %v330
        %v332 = vpop.f32.mrb[0].mxu0
        %333 = vmatprep.mubr.f32.mxu0 0.0
        %334 = vmatmul.mubr.f32.gmra.mrb[0].mxu0 %v254
        %v335 = vpop.f32.mrb[0].mxu0
        %v336 = vadd.f32 0.0, %v335
        %v337 = vpop.f32.mrb[0].mxu0
        %338 = vmatprep.mubr.f32.mxu0 0.0
        %339 = vmatmul.mubr.f32.gmra.mrb[0].mxu0 %v257
        %v340 = vpop.f32.mrb[0].mxu0
        %v341 = vadd.f32 0.0, %v340
        %v342 = vpop.f32.mrb[0].mxu0
        %343 = vdwg.mxu0
        %s344 = sld [smem:[#allocation6]]
        %v345 = vstv %s344
        %v346 = vmul.f32 %v345, %v326
        %s347 = sld [smem:[#allocation6 + $0x1]]
        %v348 = vstv %s347
        %v349 = vmul.f32 %v348, %v331
        %v350 = vadd.f32 %v346, %v349
        %s351 = sld [smem:[#allocation6 + $0x2]]
        %v352 = vstv %s351
        %v353 = vmul.f32 %v352, %v336
        %v354 = vadd.f32 %v350, %v353
        %s355 = sld [smem:[#allocation6 + $0x3]]
        %v356 = vstv %s355
        %v357 = vmul.f32 %v356, %v341
        %v358 = vadd.f32 %v354, %v357
        %vm359 = vcmask 64512
        %360 = vst.msk [vmem:[%s219] sm:$0xff] %vm359, %v358
        %s361 = sld [smem:[#allocation6 + $0x80]]
        %v362 = vstv %s361
        %v363 = vmul.f32 %v362, %v326
        %s364 = sld [smem:[#allocation6 + $0x81]]
        %v365 = vstv %s364
        %v366 = vmul.f32 %v365, %v331
        %v367 = vadd.f32 %v363, %v366
        %s368 = sld [smem:[#allocation6 + $0x82]]
        %v369 = vstv %s368
        %v370 = vmul.f32 %v369, %v336
        %v371 = vadd.f32 %v367, %v370
        %s372 = sld [smem:[#allocation6 + $0x83]]
        %v373 = vstv %s372
        %v374 = vmul.f32 %v373, %v341
        %v375 = vadd.f32 %v371, %v374
        %s376 = scalar_lea.vmem %s219, 8 [#allocation7]
        %377 = vst.msk [vmem:[%s376] sm:$0xff] %vm359, %v375
        %s378 = sld [smem:[#allocation6 + $0x100]]
        %v379 = vstv %s378
        %v380 = vmul.f32 %v379, %v326
        %s381 = sld [smem:[#allocation6 + $0x101]]
        %v382 = vstv %s381
        %v383 = vmul.f32 %v382, %v331
        %v384 = vadd.f32 %v380, %v383
        %s385 = sld [smem:[#allocation6 + $0x102]]
        %v386 = vstv %s385
        %v387 = vmul.f32 %v386, %v336
        %v388 = vadd.f32 %v384, %v387
        %s389 = sld [smem:[#allocation6 + $0x103]]
        %v390 = vstv %s389
        %v391 = vmul.f32 %v390, %v341
        %v392 = vadd.f32 %v388, %v391
        %s393 = scalar_lea.vmem %s219, 16 [#allocation7]
        %394 = vst.msk [vmem:[%s393] sm:$0xff] %vm359, %v392
        %s395 = sld [smem:[#allocation6 + $0x180]]
        %v396 = vstv %s395
        %v397 = vmul.f32 %v396, %v326
        %s398 = sld [smem:[#allocation6 + $0x181]]
        %v399 = vstv %s398
        %v400 = vmul.f32 %v399, %v331
        %v401 = vadd.f32 %v397, %v400
        %s402 = sld [smem:[#allocation6 + $0x182]]
        %v403 = vstv %s402
        %v404 = vmul.f32 %v403, %v336
        %v405 = vadd.f32 %v401, %v404
        %s406 = sld [smem:[#allocation6 + $0x183]]
        %v407 = vstv %s406
        %v408 = vmul.f32 %v407, %v341
        %v409 = vadd.f32 %v405, %v408
        %s410 = scalar_lea.vmem %s219, 24 [#allocation7]
        %411 = vst.msk [vmem:[%s410] sm:$0xff] %vm359, %v409
        %s412 = sld [smem:[#allocation6 + $0x200]]
        %v413 = vstv %s412
        %v414 = vmul.f32 %v413, %v326
        %s415 = sld [smem:[#allocation6 + $0x201]]
        %v416 = vstv %s415
        %v417 = vmul.f32 %v416, %v331
        %v418 = vadd.f32 %v414, %v417
        %s419 = sld [smem:[#allocation6 + $0x202]]
        %v420 = vstv %s419
        %v421 = vmul.f32 %v420, %v336
        %v422 = vadd.f32 %v418, %v421
        %s423 = sld [smem:[#allocation6 + $0x203]]
        %v424 = vstv %s423
        %v425 = vmul.f32 %v424, %v341
        %v426 = vadd.f32 %v422, %v425
        %s427 = scalar_lea.vmem %s219, 32 [#allocation7]
        %428 = vst.msk [vmem:[%s427] sm:$0xff] %vm359, %v426
        %s429 = sld [smem:[#allocation6 + $0x280]]
        %v430 = vstv %s429
        %v431 = vmul.f32 %v430, %v326
        %s432 = sld [smem:[#allocation6 + $0x281]]
        %v433 = vstv %s432
        %v434 = vmul.f32 %v433, %v331
        %v435 = vadd.f32 %v431, %v434
        %s436 = sld [smem:[#allocation6 + $0x282]]
        %v437 = vstv %s436
        %v438 = vmul.f32 %v437, %v336
        %v439 = vadd.f32 %v435, %v438
        %s440 = sld [smem:[#allocation6 + $0x283]]
        %v441 = vstv %s440
        %v442 = vmul.f32 %v441, %v341
        %v443 = vadd.f32 %v439, %v442
        %s444 = scalar_lea.vmem %s219, 40 [#allocation7]
        %445 = vst.msk [vmem:[%s444] sm:$0xff] %vm359, %v443
        %s446 = sld [smem:[#allocation6 + $0x300]]
        %v447 = vstv %s446
        %v448 = vmul.f32 %v447, %v326
        %s449 = sld [smem:[#allocation6 + $0x301]]
        %v450 = vstv %s449
        %v451 = vmul.f32 %v450, %v331
        %v452 = vadd.f32 %v448, %v451
        %s453 = sld [smem:[#allocation6 + $0x302]]
        %v454 = vstv %s453
        %v455 = vmul.f32 %v454, %v336
        %v456 = vadd.f32 %v452, %v455
        %s457 = sld [smem:[#allocation6 + $0x303]]
        %v458 = vstv %s457
        %v459 = vmul.f32 %v458, %v341
        %v460 = vadd.f32 %v456, %v459
        %s461 = scalar_lea.vmem %s219, 48 [#allocation7]
        %462 = vst.msk [vmem:[%s461] sm:$0xff] %vm359, %v460
        %s463 = sld [smem:[#allocation6 + $0x380]]
        %v464 = vstv %s463
        %v465 = vmul.f32 %v464, %v326
        %s466 = sld [smem:[#allocation6 + $0x381]]
        %v467 = vstv %s466
        %v468 = vmul.f32 %v467, %v331
        %v469 = vadd.f32 %v465, %v468
        %s470 = sld [smem:[#allocation6 + $0x382]]
        %v471 = vstv %s470
        %v472 = vmul.f32 %v471, %v336
        %v473 = vadd.f32 %v469, %v472
        %s474 = sld [smem:[#allocation6 + $0x383]]
        %v475 = vstv %s474
        %v476 = vmul.f32 %v475, %v341
        %v477 = vadd.f32 %v473, %v476
        %s478 = scalar_lea.vmem %s219, 56 [#allocation7]
        %479 = vst.msk [vmem:[%s478] sm:$0xff] %vm359, %v477
        %s480 = sand.u32 %s113, 1
        %s481 = scalar_lea.sflag [#allocation4], %s480
        %s482 = sand.u32 %s113, 1
        %s483 = smul.addr %s482, 64
        %s484 = scalar_lea.vmem [#allocation7], %s483
        // Predicated region
        $region41: #{tpu_custom_call.1} parent=31 // pred_check
          %p485 = pneg %p123
        $region42: #{tpu_custom_call.1} parent=31 // pred_check_branch
          %487 = sbr.rel (%p485) target = $region44
        $region43: #{tpu_custom_call.1} parent=31 // pred_region
          %s489 = ssub.s32 1024, 1024
          %490 = vsyncadd %s481, %s489
          %s491 = smul.addr %s25, 8
          %s492 = sadd.s32 %s26, %s491
          %s493 = smul.addr %s492, 128
          %s494 = scalar_lea.hbm %s3, %s493
          %s495 = sshll.u32 %s484, 4
          %s496 = int_to_ptr.vmem [resolvable:$true] %s495
          %501 = dma.vmem_to_hbm [thread:$0]  %s496, 1024, %s494, %s481, 128, 128, 8
        $region44: #{tpu_custom_call.1} parent=31 // pred_fallthru
          _
      $region32: #{tpu_custom_call.1} parent=5 // pred_fallthru
        _
      %p502 = scmp.le.s32.totalorder 2, %s16
      // Predicated region
      $region45: #{tpu_custom_call.1} parent=5 // pred_check
        %p503 = pneg %p502
      $region46: #{tpu_custom_call.1} parent=5 // pred_check_branch
        %505 = sbr.rel (%p503) target = $region48
      $region47: #{tpu_custom_call.1} parent=5 // pred_region
        %s506 = ssub.s32 %s16, 2
        // Predicated region
        $region49: #{tpu_custom_call.1} parent=47 // pred_check
          %p507 = pneg %p129
        $region50: #{tpu_custom_call.1} parent=47 // pred_check_branch
          %509 = sbr.rel (%p507) target = $region52
        $region51: #{tpu_custom_call.1} parent=47 // pred_region
          %s510 = sand.u32 %s114, 1
          %s511 = scalar_lea.sflag [#allocation4], %s510
          %s512 = sand.u32 %s114, 1
          %s513 = smul.addr %s512, 64
          %s514 = scalar_lea.vmem [#allocation7], %s513
          %515 = dma.done %s511, 1024
        $region52: #{tpu_custom_call.1} parent=47 // pred_fallthru
          _
      $region48: #{tpu_custom_call.1} parent=5 // pred_fallthru
        _
    $region6: #{tpu_custom_call.1} parent=1 // loop_footer
      %s20 = sadd.s32 1, %s16
    $region7: #{tpu_custom_call.1} parent=1 // loop_footer_branch
      %15 = sbr.rel target = $region3
    $region8: #{tpu_custom_call.1} parent=1 // loop_exit
      _
    %516 = vsyncpa [#allocation3], 1
    %s517 = scalar_lea.sflag [#allocation3], 1
    %518 = vsyncpa %s517, 1
    %519 = vsyncpa [#allocation4], 1
    %s520 = scalar_lea.sflag [#allocation4], 1
    %521 = vsyncpa %s520, 1
    %522 = vsyncpa [#allocation5], 1
    %s523 = scalar_lea.sflag [#allocation5], 1
    %524 = vsyncpa %s523, 1

</llo_original>
